<compile_context>
chip_gen: v7x
topology: tpu7x:2x2x1
jax: 0.10.0
libtpu: 0.0.40
codegen_flags: <defaults>
</compile_context>

<pallas_src>
import jax
import jax.numpy as jnp
from jax.experimental import pallas as pl
from jax.experimental.pallas import tpu as pltpu


def core_kernel(x_ref, minit_ref, gv_ref, gm_ref, bdmask_ref, vocab_ref, par_ref,
                out_ref, m_state):
    # x_ref     : (1, Tv, D) f32 VMEM  -- memes_from_input for this tick
    # minit_ref : (N, D)     f32 VMEM  -- memes_from_last_tick at t == 0
    # gv_ref    : (N, Tv)    f32 VMEM  -- one-hot gather counts / K (vision rows)
    # gm_ref    : (N, N)     f32 VMEM  -- one-hot gather counts / K (recurrent rows)
    # bdmask_ref: (N, N*D)   f32 VMEM  -- block-diagonal 0/1 mask (precomputed)
    # vocab_ref : (N, D, V)  f32 VMEM  -- vocab, natural layout (single copy, resident)
    # par_ref   : (3,)       f32 SMEM  -- [soft_clip, 1/soft_clip, log(sharpness)]
    # out_ref   : (1, N, D)  f32 VMEM  -- per-tick output block
    # m_state   : (N, D)     f32 VMEM scratch -- recurrent state carried across ticks
    t = pl.program_id(0)
    N, D = m_state.shape
    V = vocab_ref.shape[2]

    @pl.when(t == 0)
    def _():
        m_state[...] = minit_ref[...]

    # ---------------- spread ----------------
    # cat([memes_from_input, memes_from_last_tick])[input_indices].mean(1)
    #   == gv @ memes_from_input + gm @ memes_from_last_tick
    # (concat fused; 1/K mean folded into the gather matrices).
    x_t = x_ref[0]                                                      # (Tv, D)
    g = (jnp.dot(gv_ref[...], x_t, preferred_element_type=jnp.float32)
         + jnp.dot(gm_ref[...], m_state[...], preferred_element_type=jnp.float32))

    # Global normalization (torch.std is unbiased, ddof=1), one-pass mean/var.
    n_elems = N * D
    s1 = jnp.sum(g)
    s2 = jnp.sum(g * g)
    mu = s1 * (1.0 / n_elems)
    var = (s2 - s1 * mu) * (1.0 / (n_elems - 1))
    inv_std = jax.lax.rsqrt(var)           # EUP; no epsilon (matches reference)
    x = g * inv_std - mu * inv_std         # folded (g - mu) * inv_std, (N, D) f32

    # -------- remix: dp = einsum('ne,nev->nv') as ONE small MXU matmul --------
    # Block-diagonal lhs formed with a single multiply against the precomputed mask:
    #   xbd[n, m*D + e] = x[n, e] if m == n else 0
    x_tiled = jnp.concatenate([x] * N, axis=1)                          # (N, N*D)
    xbd = bdmask_ref[...] * x_tiled
    vflat = vocab_ref[...].reshape(N * D, V)                            # free reshape
    dp = jnp.dot(xbd, vflat, preferred_element_type=jnp.float32)        # (N, V) f32

    # -------- dot_products_to_fractions (row-wise over V, all f32) --------
    soft_clip = par_ref[0]
    inv_soft_clip = par_ref[1]
    log_sharp = par_ref[2]                 # sharpness ** y == exp(y * log(sharpness))
    s1r = jnp.sum(dp, axis=1, keepdims=True)                            # (N, 1)
    s2r = jnp.sum(dp * dp, axis=1, keepdims=True)                       # (N, 1)
    mur = s1r * (1.0 / V)
    varr = (s2r - s1r * mur) * (1.0 / (V - 1))
    inv_sd = pl.reciprocal(jnp.sqrt(varr) + 0.001, approx=True)         # EUP
    y = dp * inv_sd - mur * inv_sd
    y = jnp.tanh(y * inv_soft_clip) * soft_clip
    fr = jnp.exp(y * log_sharp)
    inv_den = pl.reciprocal(jnp.sum(fr, axis=1, keepdims=True) + 0.001, approx=True)
    fr = fr * inv_den                                                   # (N, V) f32

    # -------- out = einsum('nev,nv->ne') on the VPU/XLU (no transposed vocab) ------
    # Broadcast fr over each node's D rows, multiply, lane-reduce over V.
    out = jnp.sum(vocab_ref[...] * fr[:, None, :], axis=2)              # (N, D) f32

    m_state[...] = out                     # carry recurrent state to the next tick
    out_ref[0] = out


def prepare_core_layouts(input_indices, vision_num_memes, num_nodes, meme_dim):
    """One-time prep (NOT in the per-tick hot path).

    Returns the gather matrices (one-hot index counts with the 1/K mean folded in,
    split into the vision part and the recurrent part of the fused concat) and the
    block-diagonal mask used to build the lhs of the dp matmul.
    """
    _, k = input_indices.shape
    onehot = jax.nn.one_hot(input_indices, vision_num_memes + num_nodes,
                            dtype=jnp.float32)                          # (N, K, Tv+N)
    counts = jnp.sum(onehot, axis=1) * (1.0 / k)                        # (N, Tv+N)
    gather_v = counts[:, :vision_num_memes]                             # (N, Tv)
    gather_m = counts[:, vision_num_memes:]                             # (N, N)
    bdmask = jnp.repeat(jnp.eye(num_nodes, dtype=jnp.float32),
                        meme_dim, axis=1)                               # (N, N*D)
    return gather_v, gather_m, bdmask


def _core_forward_ticks_impl(x_seq, memes_last, gather_v, gather_m, bdmask, vocab,
                             raw_soft_clip, raw_sharpness):
    T, Tv, D = x_seq.shape
    N = memes_last.shape[0]
    V = vocab.shape[2]
    soft_clip = jnp.exp(raw_soft_clip[0])
    params = jnp.stack([soft_clip, 1.0 / soft_clip,
                        raw_sharpness[0]]).astype(jnp.float32)          # (3,) -> SMEM

    grid_spec = pltpu.PrefetchScalarGridSpec(
        num_scalar_prefetch=0,
        grid=(T,),
        in_specs=[
            pl.BlockSpec((1, Tv, D), lambda t: (t, 0, 0)),        # per-tick vision input
            pl.BlockSpec((N, D), lambda t: (0, 0)),               # initial recurrent state
            pl.BlockSpec((N, Tv), lambda t: (0, 0)),              # gather (vision part)
            pl.BlockSpec((N, N), lambda t: (0, 0)),               # gather (recurrent part)
            pl.BlockSpec((N, N * D), lambda t: (0, 0)),           # block-diag mask
            pl.BlockSpec((N, D, V), lambda t: (0, 0, 0)),         # vocab (VMEM resident)
            pl.BlockSpec(memory_space=pltpu.MemorySpace.SMEM),    # scalar params
        ],
        # Per-tick (1, N, D) output block; last dim (32) < 128 lanes -> masked
        # stores, acknowledged as negligible at this size.
        out_specs=pl.BlockSpec((1, N, D), lambda t: (t, 0, 0)),
        scratch_shapes=[pltpu.VMEM((N, D), jnp.float32)],         # recurrent state carry
    )
    return pl.pallas_call(
        core_kernel,
        out_shape=jax.ShapeDtypeStruct((T, N, D), jnp.float32),
        grid_spec=grid_spec,
        compiler_params=pltpu.CompilerParams(
            dimension_semantics=("arbitrary",)),                  # tick recurrence
    )(
        x_seq.astype(jnp.float32),
        memes_last.astype(jnp.float32),
        gather_v.astype(jnp.float32),
        gather_m.astype(jnp.float32),
        bdmask.astype(jnp.float32),
        vocab.astype(jnp.float32),
        params,
    )


# jit fuses the tiny wrapper ops (two scalar exps, casts) with the kernel launch.
core_forward_ticks = jax.jit(_core_forward_ticks_impl)


def core_forward(x, memes_last, gather_v, gather_m, bdmask, vocab,
                 raw_soft_clip, raw_sharpness):
    """Single-tick Core.forward: returns (output, new memes_from_last_tick)."""
    out = core_forward_ticks(x[None], memes_last, gather_v, gather_m, bdmask, vocab,
                             raw_soft_clip, raw_sharpness)[0]
    return out, out


def core_forward_ref(x_in, memes_last, input_indices, vocab, raw_soft_clip,
                     raw_sharpness):
    """Pure-JAX reference mirroring the PyTorch code (for validation only)."""
    x_all = jnp.concatenate([x_in, memes_last], axis=0)
    g = x_all[input_indices].mean(axis=1)
    g = g - g.mean()
    g = g / jnp.std(g, ddof=1)
    dp = jnp.einsum('ne,nev->nv', g, vocab)
    sc = jnp.exp(raw_soft_clip[0])
    sh = jnp.exp(raw_sharpness[0])
    dp = dp - dp.mean(axis=1, keepdims=True)
    dp = dp / (jnp.std(dp, ddof=1, axis=1, keepdims=True) + 0.001)
    dp = jnp.tanh(dp / sc) * sc
    fr = sh ** dp
    fr = fr / (fr.sum(axis=1, keepdims=True) + 0.001)
    return jnp.einsum('nev,nv->ne', vocab, fr)


if __name__ == "__main__":
    # Module hyper-parameters (small, consistent with Core.__init__)
    meme_dim = 32
    num_nodes = 8
    vision_num_memes = 8
    inputs_per_node = 4
    vocab_size = 128
    soft_clip = 3.0
    sharpness = 2.0
    num_ticks = 4

    key = jax.random.PRNGKey(0)
    k1, k2, k3, k4 = jax.random.split(key, 4)

    # Parameters / buffers (deterministic synthetic init, shapes from __init__)
    raw_soft_clip = jnp.log(jnp.array([soft_clip], dtype=jnp.float32))
    raw_sharpness = jnp.log(jnp.array([sharpness], dtype=jnp.float32))
    memes_from_last_tick = jax.random.normal(k1, (num_nodes, meme_dim), jnp.float32)
    input_indices = jax.random.randint(
        k2, (num_nodes, inputs_per_node), 0, num_nodes + vision_num_memes, jnp.int32)
    vocab = jax.random.normal(k3, (num_nodes, meme_dim, vocab_size), jnp.float32)

    # Forward inputs: one memes_from_input per tick.
    x_seq = jax.random.normal(k4, (num_ticks, vision_num_memes, meme_dim), jnp.float32)

    # One-time layout prep (hoisted out of the per-tick hot path).
    gather_v, gather_m, bdmask = prepare_core_layouts(
        input_indices, vision_num_memes, num_nodes, meme_dim)

    # TODO(synk): `info.core_spread_time` / `core_remix_time` wall-clock bookkeeping
    # is host-side Python and has no kernel equivalent.

    # Pure-JAX per-tick reference recurrence (Core.forward called num_ticks times).
    ref_state = memes_from_last_tick
    ref_outs = []
    for t in range(num_ticks):
        r = core_forward_ref(x_seq[t], ref_state, input_indices, vocab,
                             raw_soft_clip, raw_sharpness)
        ref_outs.append(r)
        ref_state = r
    ref = jax.block_until_ready(jnp.stack(ref_outs))

    # Fused multi-tick kernel call (vocab resident in VMEM across all ticks).
    out = core_forward_ticks(x_seq, memes_from_last_tick, gather_v, gather_m,
                             bdmask, vocab, raw_soft_clip, raw_sharpness)
    out = jax.block_until_ready(out)
    assert out.shape == (num_ticks, num_nodes, meme_dim)
    max_err = float(jnp.max(jnp.abs(out - ref)))
    assert max_err < 1e-2, f"multi-tick mismatch vs reference: max abs err = {max_err}"

    # Single-tick wrapper (== Core.forward semantics for one tick).
    out1, new_state = core_forward(x_seq[0], memes_from_last_tick, gather_v, gather_m,
                                   bdmask, vocab, raw_soft_clip, raw_sharpness)
    out1 = jax.block_until_ready(out1)
    max_err1 = float(jnp.max(jnp.abs(out1 - ref_outs[0])))
    assert max_err1 < 1e-2, f"single-tick mismatch vs reference: max abs err = {max_err1}"

    print("KERNEL_OK")
</pallas_src>

<mosaic_0001>
module attributes {stable_mosaic.version = 11 : i64} {
  func.func @core_kernel(%arg0: i32, %arg1: memref<1x8x32xf32, #tpu.memory_space<vmem>>, %arg2: memref<8x32xf32, #tpu.memory_space<vmem>>, %arg3: memref<8x8xf32, #tpu.memory_space<vmem>>, %arg4: memref<8x8xf32, #tpu.memory_space<vmem>>, %arg5: memref<8x256xf32, #tpu.memory_space<vmem>>, %arg6: memref<8x32x128xf32, #tpu.memory_space<vmem>>, %arg7: memref<3xf32, #tpu.memory_space<smem>>, %arg8: memref<1x8x32xf32, #tpu.memory_space<vmem>>, %arg9: memref<8x32xf32, #tpu.memory_space<vmem>>) attributes {dimension_semantics = [#tpu.dimension_semantics<arbitrary>], iteration_bounds = array<i64: 4>, scalar_prefetch = 0 : i64, scratch_operands = 1 : i64, tpu.core_type = #tpu.core_type<tc>, window_params = [{transform_indices = @transform_0, window_bounds = array<i64: 1, 8, 32>}, {pipeline_mode = #tpu.pipeline_mode<synchronous>, transform_indices = @transform_1, window_bounds = array<i64: 8, 32>}, {pipeline_mode = #tpu.pipeline_mode<synchronous>, transform_indices = @transform_2, window_bounds = array<i64: 8, 8>}, {pipeline_mode = #tpu.pipeline_mode<synchronous>, transform_indices = @transform_3, window_bounds = array<i64: 8, 8>}, {pipeline_mode = #tpu.pipeline_mode<synchronous>, transform_indices = @transform_4, window_bounds = array<i64: 8, 256>}, {pipeline_mode = #tpu.pipeline_mode<synchronous>, transform_indices = @transform_5, window_bounds = array<i64: 8, 32, 128>}, {transform_indices = @transform_6, window_bounds = array<i64: 3>}, {transform_indices = @transform_7, window_bounds = array<i64: 1, 8, 32>}]} {
    %c0_i32 = arith.constant 0 : i32
    %0 = arith.cmpi eq, %arg0, %c0_i32 : i32
    %1 = arith.extui %0 : i1 to i32
    %c0_i32_0 = arith.constant 0 : i32
    %2 = arith.cmpi ne, %1, %c0_i32_0 : i32
    scf.if %2 {
      %c0_37 = arith.constant 0 : index
      %c0_38 = arith.constant 0 : index
      %83 = vector.load %arg2[%c0_37, %c0_38] : memref<8x32xf32, #tpu.memory_space<vmem>>, vector<8x32xf32>
      %c0_39 = arith.constant 0 : index
      %c0_40 = arith.constant 0 : index
      %84 = vector.load %arg9[%c0_39, %c0_40] : memref<8x32xf32, #tpu.memory_space<vmem>>, vector<8x32xf32>
      tpu.vector_store %arg9[%c0_39, %c0_40], %83 {strides = array<i32>} : memref<8x32xf32, #tpu.memory_space<vmem>>, vector<8x32xf32>,
    } else {
    }
    %c0 = arith.constant 0 : index
    %c0_1 = arith.constant 0 : index
    %c0_2 = arith.constant 0 : index
    %3 = vector.load %arg1[%c0, %c0_1, %c0_2] : memref<1x8x32xf32, #tpu.memory_space<vmem>>, vector<1x8x32xf32>
    %4 = vector.shape_cast %3 : vector<1x8x32xf32> to vector<8x32xf32>
    %c0_3 = arith.constant 0 : index
    %c0_4 = arith.constant 0 : index
    %5 = vector.load %arg3[%c0_3, %c0_4] : memref<8x8xf32, #tpu.memory_space<vmem>>, vector<8x8xf32>
    %cst = arith.constant dense<0.000000e+00> : vector<8x32xf32>
    %6 = tpu.matmul %5, %4, %cst {dimension_numbers = #tpu.dot_dimension_numbers<[1], [0], [0], [1], [0, 0, 1, 1], [], []>} : vector<8x8xf32>, vector<8x32xf32>, vector<8x32xf32> -> vector<8x32xf32>
    %c0_5 = arith.constant 0 : index
    %c0_6 = arith.constant 0 : index
    %7 = vector.load %arg4[%c0_5, %c0_6] : memref<8x8xf32, #tpu.memory_space<vmem>>, vector<8x8xf32>
    %c0_7 = arith.constant 0 : index
    %c0_8 = arith.constant 0 : index
    %8 = vector.load %arg9[%c0_7, %c0_8] : memref<8x32xf32, #tpu.memory_space<vmem>>, vector<8x32xf32>
    %cst_9 = arith.constant dense<0.000000e+00> : vector<8x32xf32>
    %9 = tpu.matmul %7, %8, %cst_9 {dimension_numbers = #tpu.dot_dimension_numbers<[1], [0], [0], [1], [0, 0, 1, 1], [], []>} : vector<8x8xf32>, vector<8x32xf32>, vector<8x32xf32> -> vector<8x32xf32>
    %10 = arith.addf %6, %9 : vector<8x32xf32>
    %11 = vector.shape_cast %10 : vector<8x32xf32> to vector<1x8x32xf32>
    %cst_10 = arith.constant dense<0.000000e+00> : vector<1xf32>
    %12 = vector.multi_reduction <add>, %11, %cst_10 [1, 2] : vector<1x8x32xf32> to vector<1xf32>
    %13 = vector.shape_cast %12 : vector<1xf32> to vector<1x1x1xf32>
    %14 = vector.extract %13[0, 0, 0] : f32 from vector<1x1x1xf32>
    %15 = arith.mulf %10, %10 : vector<8x32xf32>
    %16 = vector.shape_cast %15 : vector<8x32xf32> to vector<1x8x32xf32>
    %cst_11 = arith.constant dense<0.000000e+00> : vector<1xf32>
    %17 = vector.multi_reduction <add>, %16, %cst_11 [1, 2] : vector<1x8x32xf32> to vector<1xf32>
    %18 = vector.shape_cast %17 : vector<1xf32> to vector<1x1x1xf32>
    %19 = vector.extract %18[0, 0, 0] : f32 from vector<1x1x1xf32>
    %cst_12 = arith.constant 3.906250e-03 : f32
    %20 = arith.mulf %14, %cst_12 : f32
    %21 = arith.mulf %14, %20 : f32
    %22 = arith.subf %19, %21 : f32
    %cst_13 = arith.constant 0.00392156886 : f32
    %23 = arith.mulf %22, %cst_13 : f32
    %24 = math.rsqrt %23 : f32
    %25 = vector.broadcast %24 : f32 to vector<8x32xf32>
    %26 = arith.mulf %10, %25 : vector<8x32xf32>
    %27 = arith.mulf %20, %24 : f32
    %28 = vector.broadcast %27 : f32 to vector<8x32xf32>
    %29 = arith.subf %26, %28 : vector<8x32xf32>
    %30 = tpu.concatenate %29, %29, %29, %29, %29, %29, %29, %29 in 1 : vector<8x32xf32>, vector<8x32xf32>, vector<8x32xf32>, vector<8x32xf32>, vector<8x32xf32>, vector<8x32xf32>, vector<8x32xf32>, vector<8x32xf32> -> vector<8x256xf32>
    %c0_14 = arith.constant 0 : index
    %c0_15 = arith.constant 0 : index
    %31 = vector.load %arg5[%c0_14, %c0_15] : memref<8x256xf32, #tpu.memory_space<vmem>>, vector<8x256xf32>
    %32 = arith.mulf %31, %30 : vector<8x256xf32>
    %c0_16 = arith.constant 0 : index
    %c0_17 = arith.constant 0 : index
    %c0_18 = arith.constant 0 : index
    %33 = vector.load %arg6[%c0_16, %c0_17, %c0_18] : memref<8x32x128xf32, #tpu.memory_space<vmem>>, vector<8x32x128xf32>
    %34 = vector.shape_cast %33 : vector<8x32x128xf32> to vector<256x128xf32>
    %cst_19 = arith.constant dense<0.000000e+00> : vector<8x128xf32>
    %35 = tpu.matmul %32, %34, %cst_19 {dimension_numbers = #tpu.dot_dimension_numbers<[1], [0], [0], [1], [0, 0, 1, 1], [], []>} : vector<8x256xf32>, vector<256x128xf32>, vector<8x128xf32> -> vector<8x128xf32>
    %c0_20 = arith.constant 0 : index
    %36 = memref.load %arg7[%c0_20] : memref<3xf32, #tpu.memory_space<smem>>
    %c1 = arith.constant 1 : index
    %37 = memref.load %arg7[%c1] : memref<3xf32, #tpu.memory_space<smem>>
    %c2 = arith.constant 2 : index
    %38 = memref.load %arg7[%c2] : memref<3xf32, #tpu.memory_space<smem>>
    %cst_21 = arith.constant dense<0.000000e+00> : vector<8xf32>
    %39 = vector.multi_reduction <add>, %35, %cst_21 [1] : vector<8x128xf32> to vector<8xf32>
    %40 = vector.shape_cast %39 : vector<8xf32> to vector<8x1xf32>
    %41 = arith.mulf %35, %35 : vector<8x128xf32>
    %cst_22 = arith.constant dense<0.000000e+00> : vector<8xf32>
    %42 = vector.multi_reduction <add>, %41, %cst_22 [1] : vector<8x128xf32> to vector<8xf32>
    %43 = vector.shape_cast %42 : vector<8xf32> to vector<8x1xf32>
    %cst_23 = arith.constant 7.812500e-03 : f32
    %44 = vector.broadcast %cst_23 : f32 to vector<8x1xf32>
    %45 = arith.mulf %40, %44 : vector<8x1xf32>
    %46 = arith.mulf %40, %45 : vector<8x1xf32>
    %47 = arith.subf %43, %46 : vector<8x1xf32>
    %cst_24 = arith.constant 0.00787401571 : f32
    %48 = vector.broadcast %cst_24 : f32 to vector<8x1xf32>
    %49 = arith.mulf %47, %48 : vector<8x1xf32>
    %50 = math.sqrt %49 : vector<8x1xf32>
    %cst_25 = arith.constant 1.000000e-03 : f32
    %51 = vector.broadcast %cst_25 : f32 to vector<8x1xf32>
    %52 = arith.addf %50, %51 : vector<8x1xf32>
    %53 = tpu.reciprocal %52 {approx = true} : vector<8x1xf32> -> vector<8x1xf32>
    %54 = vector.broadcast %53 : vector<8x1xf32> to vector<8x128xf32>
    %55 = arith.mulf %35, %54 : vector<8x128xf32>
    %56 = arith.mulf %45, %53 : vector<8x1xf32>
    %57 = vector.broadcast %56 : vector<8x1xf32> to vector<8x128xf32>
    %58 = arith.subf %55, %57 : vector<8x128xf32>
    %59 = vector.broadcast %37 : f32 to vector<8x128xf32>
    %60 = arith.mulf %58, %59 : vector<8x128xf32>
    %61 = math.tanh %60 : vector<8x128xf32>
    %62 = vector.broadcast %36 : f32 to vector<8x128xf32>
    %63 = arith.mulf %61, %62 : vector<8x128xf32>
    %64 = vector.broadcast %38 : f32 to vector<8x128xf32>
    %65 = arith.mulf %63, %64 : vector<8x128xf32>
    %66 = math.exp %65 : vector<8x128xf32>
    %cst_26 = arith.constant dense<0.000000e+00> : vector<8xf32>
    %67 = vector.multi_reduction <add>, %66, %cst_26 [1] : vector<8x128xf32> to vector<8xf32>
    %68 = vector.shape_cast %67 : vector<8xf32> to vector<8x1xf32>
    %cst_27 = arith.constant 1.000000e-03 : f32
    %69 = vector.broadcast %cst_27 : f32 to vector<8x1xf32>
    %70 = arith.addf %68, %69 : vector<8x1xf32>
    %71 = tpu.reciprocal %70 {approx = true} : vector<8x1xf32> -> vector<8x1xf32>
    %72 = vector.broadcast %71 : vector<8x1xf32> to vector<8x128xf32>
    %73 = arith.mulf %66, %72 : vector<8x128xf32>
    %c0_28 = arith.constant 0 : index
    %c0_29 = arith.constant 0 : index
    %c0_30 = arith.constant 0 : index
    %74 = vector.load %arg6[%c0_28, %c0_29, %c0_30] : memref<8x32x128xf32, #tpu.memory_space<vmem>>, vector<8x32x128xf32>
    %75 = vector.shape_cast %73 : vector<8x128xf32> to vector<8x1x128xf32>
    %76 = vector.broadcast %75 : vector<8x1x128xf32> to vector<8x32x128xf32>
    %77 = arith.mulf %74, %76 : vector<8x32x128xf32>
    %cst_31 = arith.constant dense<0.000000e+00> : vector<8x32xf32>
    %78 = vector.multi_reduction <add>, %77, %cst_31 [2] : vector<8x32x128xf32> to vector<8x32xf32>
    %c0_32 = arith.constant 0 : index
    %c0_33 = arith.constant 0 : index
    %79 = vector.load %arg9[%c0_32, %c0_33] : memref<8x32xf32, #tpu.memory_space<vmem>>, vector<8x32xf32>
    tpu.vector_store %arg9[%c0_32, %c0_33], %78 {strides = array<i32>} : memref<8x32xf32, #tpu.memory_space<vmem>>, vector<8x32xf32>,
    %c0_34 = arith.constant 0 : index
    %c0_35 = arith.constant 0 : index
    %c0_36 = arith.constant 0 : index
    %80 = vector.load %arg8[%c0_34, %c0_35, %c0_36] : memref<1x8x32xf32, #tpu.memory_space<vmem>>, vector<1x8x32xf32>
    %81 = vector.shape_cast %80 : vector<1x8x32xf32> to vector<8x32xf32>
    %82 = vector.shape_cast %78 : vector<8x32xf32> to vector<1x8x32xf32>
    tpu.vector_store %arg8[%c0_34, %c0_35, %c0_36], %82 {strides = array<i32>} : memref<1x8x32xf32, #tpu.memory_space<vmem>>, vector<1x8x32xf32>,
    return
  }
  func.func @transform_0(%arg0: i32) -> (i32, i32, i32) {
    %c0_i32 = arith.constant 0 : i32
    %c0_i32_0 = arith.constant 0 : i32
    %c0_i32_1 = arith.constant 0 : i32
    return %arg0, %c0_i32, %c0_i32_0 : i32, i32, i32
  }
  func.func @transform_1(%arg0: i32) -> (i32, i32) {
    %c0_i32 = arith.constant 0 : i32
    %c0_i32_0 = arith.constant 0 : i32
    %c0_i32_1 = arith.constant 0 : i32
    return %c0_i32, %c0_i32_0 : i32, i32
  }
  func.func @transform_2(%arg0: i32) -> (i32, i32) {
    %c0_i32 = arith.constant 0 : i32
    %c0_i32_0 = arith.constant 0 : i32
    %c0_i32_1 = arith.constant 0 : i32
    return %c0_i32, %c0_i32_0 : i32, i32
  }
  func.func @transform_3(%arg0: i32) -> (i32, i32) {
    %c0_i32 = arith.constant 0 : i32
    %c0_i32_0 = arith.constant 0 : i32
    %c0_i32_1 = arith.constant 0 : i32
    return %c0_i32, %c0_i32_0 : i32, i32
  }
  func.func @transform_4(%arg0: i32) -> (i32, i32) {
    %c0_i32 = arith.constant 0 : i32
    %c0_i32_0 = arith.constant 0 : i32
    %c0_i32_1 = arith.constant 0 : i32
    return %c0_i32, %c0_i32_0 : i32, i32
  }
  func.func @transform_5(%arg0: i32) -> (i32, i32, i32) {
    %c0_i32 = arith.constant 0 : i32
    %c0_i32_0 = arith.constant 0 : i32
    %c0_i32_1 = arith.constant 0 : i32
    %c0_i32_2 = arith.constant 0 : i32
    return %c0_i32, %c0_i32_0, %c0_i32_1 : i32, i32, i32
  }
  func.func @transform_6(%arg0: i32) -> i32 {
    %c0_i32 = arith.constant 0 : i32
    %c0_i32_0 = arith.constant 0 : i32
    return %c0_i32 : i32
  }
  func.func @transform_7(%arg0: i32) -> (i32, i32, i32) {
    %c0_i32 = arith.constant 0 : i32
    %c0_i32_0 = arith.constant 0 : i32
    %c0_i32_1 = arith.constant 0 : i32
    return %arg0, %c0_i32, %c0_i32_0 : i32, i32, i32
  }
}

</mosaic_0001>

<llo_original>
// kernel: _core_forward_ticks_impl.1
$region0: #{_core_forward_ticks_impl.1}
  #allocation0 [shape = 'u32[]', space=smem, size = 0x4, offset = 0x4, fixed_abs, tag = 'smem constant byte address 0x4 - core index']
  #allocation1 [shape = 'u32[144,128]{1,0:T(1,128)}', space=vmem, size = 0x12000, scoped, tag = 'internal scratch']
  #allocation2 [shape = 'f32[8,32]{1,0:T(8,128)}', space=vmem, size = 0x1000, scoped, tag = 'scratch operand']
  %s0 = inlined_call_operand.hbm [shape: f32[4,8,32], index: 0, kind: input, shape index: {}]
  %s1 = inlined_call_operand.vmem [shape: f32[8,32], index: 1, kind: input, shape index: {}]
  %s2 = inlined_call_operand.hbm [shape: f32[8,8], index: 2, kind: input, shape index: {}]
  %s3 = inlined_call_operand.vmem [shape: f32[8,8], index: 3, kind: input, shape index: {}]
  %s4 = inlined_call_operand.vmem [shape: f32[8,256], index: 4, kind: input, shape index: {}]
  %s5 = inlined_call_operand.hbm [shape: f32[8,32,128], index: 5, kind: input, shape index: {}]
  %s6 = inlined_call_operand.vmem [shape: f32[3], index: 6, kind: input, shape index: {}]
  %s7 = inlined_call_operand.hbm [shape: f32[4,8,32], index: 7, kind: output, shape index: {}]
  %s8 = sld [smem:[#allocation0]]
  $region81: #{_core_forward_ticks_impl.1} parent=0
    _
  %s10 = ssub.s32 1, %s8
  %s11 = scalar_select 0, %s10, %s8
  $region1: #{_core_forward_ticks_impl.1} parent=0
    #allocation3 [shape = 'u8[8192]{0}', space=vmem, size = 0x2000, scoped, tag = 'input window, operand 0']
    #allocation4 [shape = 's32[2]{0}', space=sflag, size = 0x8, scoped, tag = 'scoped memory for _core_forward_ticks_impl.1']
    #allocation5 [shape = 's32[2]{0}', space=sflag, size = 0x8, scoped, tag = 'scoped memory for _core_forward_ticks_impl.1']
    #allocation6 [shape = 's32[2]{0}', space=sflag, size = 0x8, scoped, tag = 'scoped memory for _core_forward_ticks_impl.1']
    #allocation7 [shape = 'u8[4096]{0}', space=vmem, size = 0x1000, scoped, tag = 'input window, operand 2, single buffered']
    #allocation8 [shape = 's32[1]{0}', space=sflag, size = 0x4, scoped, tag = 'scoped memory for _core_forward_ticks_impl.1']
    #allocation9 [shape = 'u8[131072]{0}', space=vmem, size = 0x20000, scoped, tag = 'input window, operand 5, single buffered']
    #allocation10 [shape = 'u8[512]{0}', space=smem, size = 0x200, scoped, tag = 'input window, operand 6, single buffered']
    #allocation11 [shape = 'u8[8192]{0}', space=vmem, size = 0x2000, scoped, tag = 'output window, operand 0']
    %12 = vsyncpa [#allocation4], 0
    %s13 = scalar_lea.sflag [#allocation4], 1
    %14 = vsyncpa %s13, 0
    %15 = vsyncpa [#allocation8], 0
    %16 = vsyncpa [#allocation6], 0
    %17 = vsyncpa [#allocation5], 0
    %s18 = scalar_lea.sflag [#allocation5], 1
    %19 = vsyncpa %s18, 0
    loop: start=0, step=1, limit=6
    $region2: #{_core_forward_ticks_impl.1} parent=1 // loop_pre_header
      _
    $region3: #{_core_forward_ticks_impl.1} parent=1 // loop_header
      %s21 = sphi 0, %s25
      %p22 = scmp.ge.s32.totalorder %s21, 6
      %s31 = sphi 0, %s33
      %s34 = sphi 0, %s31
      %s35 = sphi 0, %s34
      %s51 = sphi 0, %s35
      %s55 = sphi 0, %s55
      %s57 = sphi 0, %s55
      %s58 = sphi 0, %s57
      %s72 = sphi 0, %s58
      %s76 = sphi 0, %s76
      %s78 = sphi 0, %s76
      %s79 = sphi 0, %s78
      %s93 = sphi 0, %s79
      %s97 = sphi 0, %s97
      %s99 = sphi 0, %s97
      %s100 = sphi 0, %s99
      %s114 = sphi 0, %s100
      %s118 = sphi 0, %s118
      %s120 = sphi 0, %s118
      %s121 = sphi 0, %s120
      %s135 = sphi 0, %s121
      %s139 = sphi 0, %s139
      %s141 = sphi 0, %s139
      %s142 = sphi 0, %s141
      %s156 = sphi 0, %s142
      %s160 = sphi 0, %s160
      %s162 = sphi 0, %s160
      %s163 = sphi 0, %s162
      %s177 = sphi 0, %s163
      %s183 = sphi 0, %s185
      %s186 = sphi 0, %s183
      %s187 = sphi 0, %s186
      %s203 = sphi 0, %s187
    $region4: #{_core_forward_ticks_impl.1} parent=1 // loop_header_branch
      %24 = sbr.rel (%p22) target = $region8
    $region5: #{_core_forward_ticks_impl.1} parent=1 // loop_body
      %s26 = ssub.s32 %s21, 1
      %s27 = ssub.s32 %s21, 2
      %s28 = sadd.s32 %s21, 1
      %s29 = ssub.s32 %s21, %s28
      %p30 = scmp.eq.s32.totalorder %s29, 0
      %s32 = sadd.s32 %s31, 1
      %s33 = scalar_select %p30, %s31, %s32
      %p36 = pneg %p30
      %p37 = scmp.eq.s32.totalorder %s21, 3
      %p38 = por %p36, %p37
      %p39 = scmp.ne.s32.totalorder %s31, %s34
      %p40 = scmp.eq.s32.totalorder %s21, 0
      %p41 = por %p39, %p40
      %p42 = scmp.ne.s32.totalorder %s31, %s34
      %p43 = scmp.eq.s32.totalorder %s26, 3
      %p44 = por %p42, %p43
      %p45 = scmp.ne.s32.totalorder %s34, %s35
      %p46 = scmp.eq.s32.totalorder %s26, 0
      %p47 = por %p45, %p46
      %p48 = scmp.ne.s32.totalorder %s34, %s35
      %p49 = scmp.eq.s32.totalorder %s27, 3
      %p50 = por %p48, %p49
      %p52 = scmp.ne.s32.totalorder %s35, %s51
      %p53 = scmp.eq.s32.totalorder %s27, 0
      %p54 = por %p52, %p53
      %s56 = sadd.s32 %s55, 1
      %p59 = scmp.eq.s32.totalorder %s21, 3
      %p60 = scmp.ne.s32.totalorder %s55, %s57
      %p61 = scmp.eq.s32.totalorder %s21, 0
      %p62 = por %p60, %p61
      %p63 = scmp.ne.s32.totalorder %s55, %s57
      %p64 = scmp.eq.s32.totalorder %s26, 3
      %p65 = por %p63, %p64
      %p66 = scmp.ne.s32.totalorder %s57, %s58
      %p67 = scmp.eq.s32.totalorder %s26, 0
      %p68 = por %p66, %p67
      %p69 = scmp.ne.s32.totalorder %s57, %s58
      %p70 = scmp.eq.s32.totalorder %s27, 3
      %p71 = por %p69, %p70
      %p73 = scmp.ne.s32.totalorder %s58, %s72
      %p74 = scmp.eq.s32.totalorder %s27, 0
      %p75 = por %p73, %p74
      %s77 = sadd.s32 %s76, 1
      %p80 = scmp.eq.s32.totalorder %s21, 3
      %p81 = scmp.ne.s32.totalorder %s76, %s78
      %p82 = scmp.eq.s32.totalorder %s21, 0
      %p83 = por %p81, %p82
      %p84 = scmp.ne.s32.totalorder %s76, %s78
      %p85 = scmp.eq.s32.totalorder %s26, 3
      %p86 = por %p84, %p85
      %p87 = scmp.ne.s32.totalorder %s78, %s79
      %p88 = scmp.eq.s32.totalorder %s26, 0
      %p89 = por %p87, %p88
      %p90 = scmp.ne.s32.totalorder %s78, %s79
      %p91 = scmp.eq.s32.totalorder %s27, 3
      %p92 = por %p90, %p91
      %p94 = scmp.ne.s32.totalorder %s79, %s93
      %p95 = scmp.eq.s32.totalorder %s27, 0
      %p96 = por %p94, %p95
      %s98 = sadd.s32 %s97, 1
      %p101 = scmp.eq.s32.totalorder %s21, 3
      %p102 = scmp.ne.s32.totalorder %s97, %s99
      %p103 = scmp.eq.s32.totalorder %s21, 0
      %p104 = por %p102, %p103
      %p105 = scmp.ne.s32.totalorder %s97, %s99
      %p106 = scmp.eq.s32.totalorder %s26, 3
      %p107 = por %p105, %p106
      %p108 = scmp.ne.s32.totalorder %s99, %s100
      %p109 = scmp.eq.s32.totalorder %s26, 0
      %p110 = por %p108, %p109
      %p111 = scmp.ne.s32.totalorder %s99, %s100
      %p112 = scmp.eq.s32.totalorder %s27, 3
      %p113 = por %p111, %p112
      %p115 = scmp.ne.s32.totalorder %s100, %s114
      %p116 = scmp.eq.s32.totalorder %s27, 0
      %p117 = por %p115, %p116
      %s119 = sadd.s32 %s118, 1
      %p122 = scmp.eq.s32.totalorder %s21, 3
      %p123 = scmp.ne.s32.totalorder %s118, %s120
      %p124 = scmp.eq.s32.totalorder %s21, 0
      %p125 = por %p123, %p124
      %p126 = scmp.ne.s32.totalorder %s118, %s120
      %p127 = scmp.eq.s32.totalorder %s26, 3
      %p128 = por %p126, %p127
      %p129 = scmp.ne.s32.totalorder %s120, %s121
      %p130 = scmp.eq.s32.totalorder %s26, 0
      %p131 = por %p129, %p130
      %p132 = scmp.ne.s32.totalorder %s120, %s121
      %p133 = scmp.eq.s32.totalorder %s27, 3
      %p134 = por %p132, %p133
      %p136 = scmp.ne.s32.totalorder %s121, %s135
      %p137 = scmp.eq.s32.totalorder %s27, 0
      %p138 = por %p136, %p137
      %s140 = sadd.s32 %s139, 1
      %p143 = scmp.eq.s32.totalorder %s21, 3
      %p144 = scmp.ne.s32.totalorder %s139, %s141
      %p145 = scmp.eq.s32.totalorder %s21, 0
      %p146 = por %p144, %p145
      %p147 = scmp.ne.s32.totalorder %s139, %s141
      %p148 = scmp.eq.s32.totalorder %s26, 3
      %p149 = por %p147, %p148
      %p150 = scmp.ne.s32.totalorder %s141, %s142
      %p151 = scmp.eq.s32.totalorder %s26, 0
      %p152 = por %p150, %p151
      %p153 = scmp.ne.s32.totalorder %s141, %s142
      %p154 = scmp.eq.s32.totalorder %s27, 3
      %p155 = por %p153, %p154
      %p157 = scmp.ne.s32.totalorder %s142, %s156
      %p158 = scmp.eq.s32.totalorder %s27, 0
      %p159 = por %p157, %p158
      %s161 = sadd.s32 %s160, 1
      %p164 = scmp.eq.s32.totalorder %s21, 3
      %p165 = scmp.ne.s32.totalorder %s160, %s162
      %p166 = scmp.eq.s32.totalorder %s21, 0
      %p167 = por %p165, %p166
      %p168 = scmp.ne.s32.totalorder %s160, %s162
      %p169 = scmp.eq.s32.totalorder %s26, 3
      %p170 = por %p168, %p169
      %p171 = scmp.ne.s32.totalorder %s162, %s163
      %p172 = scmp.eq.s32.totalorder %s26, 0
      %p173 = por %p171, %p172
      %p174 = scmp.ne.s32.totalorder %s162, %s163
      %p175 = scmp.eq.s32.totalorder %s27, 3
      %p176 = por %p174, %p175
      %p178 = scmp.ne.s32.totalorder %s163, %s177
      %p179 = scmp.eq.s32.totalorder %s27, 0
      %p180 = por %p178, %p179
      %s181 = ssub.s32 %s21, %s28
      %p182 = scmp.eq.s32.totalorder %s181, 0
      %s184 = sadd.s32 %s183, 1
      %s185 = scalar_select %p182, %s183, %s184
      %p188 = pneg %p182
      %p189 = scmp.eq.s32.totalorder %s21, 3
      %p190 = por %p188, %p189
      %p191 = scmp.ne.s32.totalorder %s183, %s186
      %p192 = scmp.eq.s32.totalorder %s21, 0
      %p193 = por %p191, %p192
      %p194 = scmp.ne.s32.totalorder %s183, %s186
      %p195 = scmp.eq.s32.totalorder %s26, 3
      %p196 = por %p194, %p195
      %p197 = scmp.ne.s32.totalorder %s186, %s187
      %p198 = scmp.eq.s32.totalorder %s26, 0
      %p199 = por %p197, %p198
      %p200 = scmp.ne.s32.totalorder %s186, %s187
      %p201 = scmp.eq.s32.totalorder %s27, 3
      %p202 = por %p200, %p201
      %p204 = scmp.ne.s32.totalorder %s187, %s203
      %p205 = scmp.eq.s32.totalorder %s27, 0
      %p206 = por %p204, %p205
      %p207 = scmp.le.s32.totalorder 1, %s21
      %p208 = scmp.lt.s32.totalorder %s21, 5
      %p209 = pnand %p207, %p208
      %p210 = pneg %p209
      // Predicated region
      $region9: #{_core_forward_ticks_impl.1} parent=5 // pred_check
        _
      $region10: #{_core_forward_ticks_impl.1} parent=5 // pred_check_branch
        %212 = sbr.rel (%p209) target = $region12
      $region11: #{_core_forward_ticks_impl.1} parent=5 // pred_region
        %s213 = ssub.s32 %s21, 1
        // Predicated region
        $region13: #{_core_forward_ticks_impl.1} parent=11 // pred_check
          %p214 = pneg %p68
        $region14: #{_core_forward_ticks_impl.1} parent=11 // pred_check_branch
          %216 = sbr.rel (%p214) target = $region16
        $region15: #{_core_forward_ticks_impl.1} parent=11 // pred_region
          _
        $region16: #{_core_forward_ticks_impl.1} parent=11 // pred_fallthru
          _
        // Predicated region
        $region17: #{_core_forward_ticks_impl.1} parent=11 // pred_check
          %p217 = pneg %p89
        $region18: #{_core_forward_ticks_impl.1} parent=11 // pred_check_branch
          %219 = sbr.rel (%p217) target = $region20
        $region19: #{_core_forward_ticks_impl.1} parent=11 // pred_region
          %s221 = ssub.s32 128, 128
          %222 = vsyncadd [#allocation8], %s221
          %s224 = sshll.u32 [#allocation7], 4
          %s225 = int_to_ptr.vmem [resolvable:$true] %s224
          %227 = dma.hbm_to_vmem [thread:$0]  %s2, 128, %s225, [#allocation8]
        $region20: #{_core_forward_ticks_impl.1} parent=11 // pred_fallthru
          _
        // Predicated region
        $region21: #{_core_forward_ticks_impl.1} parent=11 // pred_check
          %p228 = pneg %p110
        $region22: #{_core_forward_ticks_impl.1} parent=11 // pred_check_branch
          %230 = sbr.rel (%p228) target = $region24
        $region23: #{_core_forward_ticks_impl.1} parent=11 // pred_region
          _
        $region24: #{_core_forward_ticks_impl.1} parent=11 // pred_fallthru
          _
        // Predicated region
        $region25: #{_core_forward_ticks_impl.1} parent=11 // pred_check
          %p231 = pneg %p131
        $region26: #{_core_forward_ticks_impl.1} parent=11 // pred_check_branch
          %233 = sbr.rel (%p231) target = $region28
        $region27: #{_core_forward_ticks_impl.1} parent=11 // pred_region
          _
        $region28: #{_core_forward_ticks_impl.1} parent=11 // pred_fallthru
          _
        // Predicated region
        $region29: #{_core_forward_ticks_impl.1} parent=11 // pred_check
          %p234 = pneg %p152
        $region30: #{_core_forward_ticks_impl.1} parent=11 // pred_check_branch
          %236 = sbr.rel (%p234) target = $region32
        $region31: #{_core_forward_ticks_impl.1} parent=11 // pred_region
          %s238 = ssub.s32 4096, 4096
          %239 = vsyncadd [#allocation8], %s238
          %s240 = sshll.u32 [#allocation9], 4
          %s241 = int_to_ptr.vmem [resolvable:$true] %s240
          %246 = dma.hbm_to_vmem [thread:$0]  %s5, 4096, %s241, [#allocation8], 128, 128, 8
        $region32: #{_core_forward_ticks_impl.1} parent=11 // pred_fallthru
          _
        // Predicated region
        $region33: #{_core_forward_ticks_impl.1} parent=11 // pred_check
          %p247 = pneg %p173
        $region34: #{_core_forward_ticks_impl.1} parent=11 // pred_check_branch
          %249 = sbr.rel (%p247) target = $region36
        $region35: #{_core_forward_ticks_impl.1} parent=11 // pred_region
          %s251 = ssub.s32 16, 16
          %252 = vsyncadd [#allocation6], %s251
          %s254 = sshll.u32 %s6, 4
          %s255 = int_to_ptr.vmem [resolvable:$true] %s254
          %257 = dma.vmem_to_smem %s255, 16, [#allocation10], [#allocation6]
        $region36: #{_core_forward_ticks_impl.1} parent=11 // pred_fallthru
          _
      $region12: #{_core_forward_ticks_impl.1} parent=5 // pred_fallthru
        _
      %p258 = scmp.lt.s32.totalorder %s21, 4
      // Predicated region
      $region37: #{_core_forward_ticks_impl.1} parent=5 // pred_check
        %p259 = pneg %p258
      $region38: #{_core_forward_ticks_impl.1} parent=5 // pred_check_branch
        %261 = sbr.rel (%p259) target = $region40
      $region39: #{_core_forward_ticks_impl.1} parent=5 // pred_region
        // Predicated region
        $region41: #{_core_forward_ticks_impl.1} parent=39 // pred_check
          %p262 = pneg %p41
        $region42: #{_core_forward_ticks_impl.1} parent=39 // pred_check_branch
          %264 = sbr.rel (%p262) target = $region44
        $region43: #{_core_forward_ticks_impl.1} parent=39 // pred_region
          %s265 = sand.u32 %s31, 1
          %s266 = scalar_lea.sflag [#allocation4], %s265
          %s267 = sand.u32 %s31, 1
          %s268 = smul.addr %s267, 8
          %s269 = scalar_lea.vmem [#allocation3], %s268
          %s271 = ssub.s32 128, 128
          %272 = vsyncadd %s266, %s271
          %s273 = smul.addr %s21, 128
          %s274 = scalar_lea.hbm %s0, %s273
          %s276 = sshll.u32 %s269, 4
          %s277 = int_to_ptr.vmem [resolvable:$true] %s276
          %279 = dma.hbm_to_vmem [thread:$0]  %s274, 128, %s277, %s266
        $region44: #{_core_forward_ticks_impl.1} parent=39 // pred_fallthru
          _
      $region40: #{_core_forward_ticks_impl.1} parent=5 // pred_fallthru
        _
      %p280 = scmp.le.s32.totalorder 1, %s21
      %p281 = scmp.lt.s32.totalorder %s21, 5
      %p282 = pnand %p280, %p281
      %p283 = pneg %p282
      // Predicated region
      $region45: #{_core_forward_ticks_impl.1} parent=5 // pred_check
        _
      $region46: #{_core_forward_ticks_impl.1} parent=5 // pred_check_branch
        %285 = sbr.rel (%p282) target = $region48
      $region47: #{_core_forward_ticks_impl.1} parent=5 // pred_region
        %s286 = ssub.s32 %s21, 1
        %s287 = sand.u32 %s34, 1
        %s288 = scalar_lea.sflag [#allocation4], %s287
        %s289 = sand.u32 %s34, 1
        %s290 = smul.addr %s289, 8
        %s291 = scalar_lea.vmem [#allocation3], %s290
        // Predicated region
        $region49: #{_core_forward_ticks_impl.1} parent=47 // pred_check
          %p292 = pneg %p47
        $region50: #{_core_forward_ticks_impl.1} parent=47 // pred_check_branch
          %294 = sbr.rel (%p292) target = $region52
        $region51: #{_core_forward_ticks_impl.1} parent=47 // pred_region
          %295 = dma.done %s288, 128
        $region52: #{_core_forward_ticks_impl.1} parent=47 // pred_fallthru
          _
        // Predicated region
        $region53: #{_core_forward_ticks_impl.1} parent=47 // pred_check
          %p296 = pneg %p89
        $region54: #{_core_forward_ticks_impl.1} parent=47 // pred_check_branch
          %298 = sbr.rel (%p296) target = $region56
        $region55: #{_core_forward_ticks_impl.1} parent=47 // pred_region
          %299 = dma.done [#allocation8], 128
        $region56: #{_core_forward_ticks_impl.1} parent=47 // pred_fallthru
          _
        // Predicated region
        $region57: #{_core_forward_ticks_impl.1} parent=47 // pred_check
          %p300 = pneg %p152
        $region58: #{_core_forward_ticks_impl.1} parent=47 // pred_check_branch
          %302 = sbr.rel (%p300) target = $region60
        $region59: #{_core_forward_ticks_impl.1} parent=47 // pred_region
          %303 = dma.done [#allocation8], 4096
        $region60: #{_core_forward_ticks_impl.1} parent=47 // pred_fallthru
          _
        // Predicated region
        $region61: #{_core_forward_ticks_impl.1} parent=47 // pred_check
          %p304 = pneg %p173
        $region62: #{_core_forward_ticks_impl.1} parent=47 // pred_check_branch
          %306 = sbr.rel (%p304) target = $region64
        $region63: #{_core_forward_ticks_impl.1} parent=47 // pred_region
          %307 = dma.done [#allocation6], 16
        $region64: #{_core_forward_ticks_impl.1} parent=47 // pred_fallthru
          _
        %308 = sfence
        %s309 = sand.u32 %s34, 1
        %s310 = scalar_lea.sflag [#allocation4], %s309
        %s311 = sand.u32 %s34, 1
        %s312 = smul.addr %s311, 8
        %s313 = scalar_lea.vmem [#allocation3], %s312
        %p314 = pneg %p47
        %p315 = pneg %p44
        %p316 = pneg %p68
        %p317 = pneg %p65
        %p318 = pneg %p89
        %p319 = pneg %p86
        %p320 = pneg %p110
        %p321 = pneg %p107
        %p322 = pneg %p131
        %p323 = pneg %p128
        %p324 = pneg %p152
        %p325 = pneg %p149
        %p326 = pneg %p173
        %p327 = pneg %p170
        %p328 = pneg %p199
        %p329 = pneg %p196
        %s330 = sand.u32 %s186, 1
        %s331 = scalar_lea.sflag [#allocation5], %s330
        %s332 = sand.u32 %s186, 1
        %s333 = smul.addr %s332, 8
        %s334 = scalar_lea.vmem [#allocation11], %s333
        %p335 = scmp.eq.s32.totalorder %s26, 0
        // Predicated region
        $region65: #{_core_forward_ticks_impl.1} parent=47 // pred_check
          %p336 = pneg %p335
        $region66: #{_core_forward_ticks_impl.1} parent=47 // pred_check_branch
          %338 = sbr.rel (%p336) target = $region68
        $region67: #{_core_forward_ticks_impl.1} parent=47 // pred_region
          %v339 = vld [vmem:[%s1] sm:$0xff]
          %vm340 = vcmask 261120
          %341 = vst.msk [vmem:[#allocation2] sm:$0xff] %vm340, %v339
        $region68: #{_core_forward_ticks_impl.1} parent=47 // pred_fallthru
          _
        %v342 = vld [vmem:[%s291] sm:$0xff]
        %v343 = vld [vmem:[#allocation7] sm:$0xff]
        %v344 = vld [vmem:[%s3] sm:$0xff]
        %v345 = vld [vmem:[#allocation2] sm:$0xff]
        %vm346 = vcmask 64512
        %v348 = vsel %vm346, %v344, 0
        %350 = vmatprep.subr.mxu0 0.0
        %351 = vmatpush1.msra.mxu0 %v345
        %352 = vmatprep.subr.mxu0 0.0
        %353 = vmatpush1.msra.mxu0 0.0
        %354 = vmatprep.subr.mxu0 0.0
        %355 = vmatpush1.msra.mxu0 0.0
        %356 = vmatprep.subr.mxu0 0.0
        %357 = vmatpush1.msra.mxu0 0.0
        %358 = vmatprep.subr.mxu0 0.0
        %359 = vmatpush1.msra.mxu0 0.0
        %360 = vmatprep.subr.mxu0 0.0
        %361 = vmatpush1.msra.mxu0 0.0
        %362 = vmatprep.subr.mxu0 0.0
        %363 = vmatpush1.msra.mxu0 0.0
        %364 = vmatprep.subr.mxu0 0.0
        %365 = vmatpush1.msra.mxu0 0.0
        %366 = vmatprep.subr.mxu0 0.0
        %367 = vmatpush1.msra.mxu0 0.0
        %368 = vmatprep.subr.mxu0 0.0
        %369 = vmatpush1.msra.mxu0 0.0
        %370 = vmatprep.subr.mxu0 0.0
        %371 = vmatpush1.msra.mxu0 0.0
        %372 = vmatprep.subr.mxu0 0.0
        %373 = vmatpush1.msra.mxu0 0.0
        %374 = vmatprep.subr.mxu0 0.0
        %375 = vmatpush1.msra.mxu0 0.0
        %376 = vmatprep.subr.mxu0 0.0
        %377 = vmatpush1.msra.mxu0 0.0
        %378 = vmatprep.subr.mxu0 0.0
        %379 = vmatpush1.msra.mxu0 0.0
        %380 = vmatprep.subr.mxu0 0.0
        %381 = vmatpush1.msra.mxu0 0.0
        %382 = vmatprep.subr.mxu0 0.0
        %383 = vmatpush1.msra.mxu0 0.0
        %384 = vmatprep.subr.mxu0 0.0
        %385 = vmatpush1.msra.mxu0 0.0
        %386 = vmatprep.subr.mxu0 0.0
        %387 = vmatpush1.msra.mxu0 0.0
        %388 = vmatprep.subr.mxu0 0.0
        %389 = vmatpush1.msra.mxu0 0.0
        %390 = vmatprep.subr.mxu0 0.0
        %391 = vmatpush1.msra.mxu0 0.0
        %392 = vmatprep.subr.mxu0 0.0
        %393 = vmatpush1.msra.mxu0 0.0
        %394 = vmatprep.subr.mxu0 0.0
        %395 = vmatpush1.msra.mxu0 0.0
        %396 = vmatprep.subr.mxu0 0.0
        %397 = vmatpush1.msra.mxu0 0.0
        %398 = vmatprep.subr.mxu0 0.0
        %399 = vmatpush1.msra.mxu0 0.0
        %400 = vmatprep.subr.mxu0 0.0
        %401 = vmatpush1.msra.mxu0 0.0
        %402 = vmatprep.subr.mxu0 0.0
        %403 = vmatpush1.msra.mxu0 0.0
        %404 = vmatprep.subr.mxu0 0.0
        %405 = vmatpush1.msra.mxu0 0.0
        %406 = vmatprep.subr.mxu0 0.0
        %407 = vmatpush1.msra.mxu0 0.0
        %408 = vmatprep.subr.mxu0 0.0
        %409 = vmatpush1.msra.mxu0 0.0
        %410 = vmatprep.subr.mxu0 0.0
        %411 = vmatpush1.msra.mxu0 0.0
        %412 = vmatprep.subr.mxu0 0.0
        %413 = vmatpush1.msra.mxu0 0.0
        %414 = vmatprep.mubr.f32.mxu0 0.0
        %415 = vmatmul.mubr.f32.gmra.mrb[0].mxu0 %v348
        %v416 = vpop.f32.mrb[0].mxu0
        %v417 = vadd.f32 0.0, %v416
        %v418 = vpop.f32.mrb[0].mxu0
        %419 = vdwg.mxu0
        %v421 = vsel %vm346, %v343, 0
        %423 = vmatprep.subr.mxu0 0.0
        %424 = vmatpush1.msra.mxu0 %v342
        %425 = vmatprep.subr.mxu0 0.0
        %426 = vmatpush1.msra.mxu0 0.0
        %427 = vmatprep.subr.mxu0 0.0
        %428 = vmatpush1.msra.mxu0 0.0
        %429 = vmatprep.subr.mxu0 0.0
        %430 = vmatpush1.msra.mxu0 0.0
        %431 = vmatprep.subr.mxu0 0.0
        %432 = vmatpush1.msra.mxu0 0.0
        %433 = vmatprep.subr.mxu0 0.0
        %434 = vmatpush1.msra.mxu0 0.0
        %435 = vmatprep.subr.mxu0 0.0
        %436 = vmatpush1.msra.mxu0 0.0
        %437 = vmatprep.subr.mxu0 0.0
        %438 = vmatpush1.msra.mxu0 0.0
        %439 = vmatprep.subr.mxu0 0.0
        %440 = vmatpush1.msra.mxu0 0.0
        %441 = vmatprep.subr.mxu0 0.0
        %442 = vmatpush1.msra.mxu0 0.0
        %443 = vmatprep.subr.mxu0 0.0
        %444 = vmatpush1.msra.mxu0 0.0
        %445 = vmatprep.subr.mxu0 0.0
        %446 = vmatpush1.msra.mxu0 0.0
        %447 = vmatprep.subr.mxu0 0.0
        %448 = vmatpush1.msra.mxu0 0.0
        %449 = vmatprep.subr.mxu0 0.0
        %450 = vmatpush1.msra.mxu0 0.0
        %451 = vmatprep.subr.mxu0 0.0
        %452 = vmatpush1.msra.mxu0 0.0
        %453 = vmatprep.subr.mxu0 0.0
        %454 = vmatpush1.msra.mxu0 0.0
        %455 = vmatprep.subr.mxu0 0.0
        %456 = vmatpush1.msra.mxu0 0.0
        %457 = vmatprep.subr.mxu0 0.0
        %458 = vmatpush1.msra.mxu0 0.0
        %459 = vmatprep.subr.mxu0 0.0
        %460 = vmatpush1.msra.mxu0 0.0
        %461 = vmatprep.subr.mxu0 0.0
        %462 = vmatpush1.msra.mxu0 0.0
        %463 = vmatprep.subr.mxu0 0.0
        %464 = vmatpush1.msra.mxu0 0.0
        %465 = vmatprep.subr.mxu0 0.0
        %466 = vmatpush1.msra.mxu0 0.0
        %467 = vmatprep.subr.mxu0 0.0
        %468 = vmatpush1.msra.mxu0 0.0
        %469 = vmatprep.subr.mxu0 0.0
        %470 = vmatpush1.msra.mxu0 0.0
        %471 = vmatprep.subr.mxu0 0.0
        %472 = vmatpush1.msra.mxu0 0.0
        %473 = vmatprep.subr.mxu0 0.0
        %474 = vmatpush1.msra.mxu0 0.0
        %475 = vmatprep.subr.mxu0 0.0
        %476 = vmatpush1.msra.mxu0 0.0
        %477 = vmatprep.subr.mxu0 0.0
        %478 = vmatpush1.msra.mxu0 0.0
        %479 = vmatprep.subr.mxu0 0.0
        %480 = vmatpush1.msra.mxu0 0.0
        %481 = vmatprep.subr.mxu0 0.0
        %482 = vmatpush1.msra.mxu0 0.0
        %483 = vmatprep.subr.mxu0 0.0
        %484 = vmatpush1.msra.mxu0 0.0
        %485 = vmatprep.subr.mxu0 0.0
        %486 = vmatpush1.msra.mxu0 0.0
        %487 = vmatprep.mubr.f32.mxu0 0.0
        %488 = vmatmul.mubr.f32.gmra.mrb[0].mxu0 %v421
        %v489 = vpop.f32.mrb[0].mxu0
        %v490 = vadd.f32 %v417, %v489
        %v491 = vpop.f32.mrb[0].mxu0
        %492 = vdwg.mxu0
        %vm493 = vcmask 261120
        %v494 = vsel %vm493, %v490, 0.0
        %495 = vadd.xlane.f32.xlu0 %v494
        %v496 = vpop.xlane.xlu0 %495
        %v497 = vrot.slane %v496, 4
        %v498 = vadd.f32 %v496, %v497
        %v499 = vrot.slane %v498, 2
        %v500 = vadd.f32 %v498, %v499
        %v501 = vrot.slane %v500, 1
        %v502 = vadd.f32 %v500, %v501
        %s503 = vtos %v502
        %v504 = vmul.f32 %v490, %v490
        %v505 = vsel %vm493, %v504, 0.0
        %506 = vadd.xlane.f32.xlu0 %v505
        %v507 = vpop.xlane.xlu0 %506
        %v508 = vrot.slane %v507, 4
        %v509 = vadd.f32 %v507, %v508
        %v510 = vrot.slane %v509, 2
        %v511 = vadd.f32 %v509, %v510
        %v512 = vrot.slane %v511, 1
        %v513 = vadd.f32 %v511, %v512
        %s514 = vtos %v513
        %s515 = smul.f32 %s503, 0.00390625
        %s516 = smul.f32 %s503, %s515
        %s517 = ssub.f32 %s514, %s516
        %s518 = smul.f32 %s517, 0.003921569
        %v519 = vstv %s518
        %v520 = vrsqrt.pop %v519
        %s521 = vtos %v520
        %v522 = vstv %s521
        %v523 = vmul.f32 %v490, %v522
        %s524 = smul.f32 %s515, %s521
        %v525 = vstv %s524
        %v526 = vsub.f32 %v523, %v525
        %528 = vrot.lane.b32.xlu0 %v526, 32
        %v529 = vpop.permute.xlu0 %528
        %531 = vrot.lane.b32.xlu0 %v526, 64
        %v532 = vpop.permute.xlu0 %531
        %534 = vrot.lane.b32.xlu0 %v526, 96
        %v535 = vpop.permute.xlu0 %534
        %v537 = vsel %vm493, %v526, %v529
        %vm538 = vcmask 523264
        %v539 = vsel %vm538, %v537, %v532
        %vm540 = vcmask 785408
        %v541 = vsel %vm540, %v539, %v535
        %v542 = vld [vmem:[%s4] sm:$0xff]
        %v543 = vld [vmem:[%s4 + $0x8] sm:$0xff]
        %v544 = vmul.f32 %v542, %v541
        %v545 = vmul.f32 %v543, %v541
        %v546 = vld [vmem:[#allocation9] sm:$0xff]
        %v547 = vld [vmem:[#allocation9 + $0x8] sm:$0xff]
        %v548 = vld [vmem:[#allocation9 + $0x10] sm:$0xff]
        %v549 = vld [vmem:[#allocation9 + $0x18] sm:$0xff]
        %v550 = vld [vmem:[#allocation9 + $0x20] sm:$0xff]
        %v551 = vld [vmem:[#allocation9 + $0x28] sm:$0xff]
        %v552 = vld [vmem:[#allocation9 + $0x30] sm:$0xff]
        %v553 = vld [vmem:[#allocation9 + $0x38] sm:$0xff]
        %v554 = vld [vmem:[#allocation9 + $0x40] sm:$0xff]
        %v555 = vld [vmem:[#allocation9 + $0x48] sm:$0xff]
        %v556 = vld [vmem:[#allocation9 + $0x50] sm:$0xff]
        %v557 = vld [vmem:[#allocation9 + $0x58] sm:$0xff]
        %v558 = vld [vmem:[#allocation9 + $0x60] sm:$0xff]
        %v559 = vld [vmem:[#allocation9 + $0x68] sm:$0xff]
        %v560 = vld [vmem:[#allocation9 + $0x70] sm:$0xff]
        %v561 = vld [vmem:[#allocation9 + $0x78] sm:$0xff]
        %v562 = vld [vmem:[#allocation9 + $0x80] sm:$0xff]
        %v563 = vld [vmem:[#allocation9 + $0x88] sm:$0xff]
        %v564 = vld [vmem:[#allocation9 + $0x90] sm:$0xff]
        %v565 = vld [vmem:[#allocation9 + $0x98] sm:$0xff]
        %v566 = vld [vmem:[#allocation9 + $0xa0] sm:$0xff]
        %v567 = vld [vmem:[#allocation9 + $0xa8] sm:$0xff]
        %v568 = vld [vmem:[#allocation9 + $0xb0] sm:$0xff]
        %v569 = vld [vmem:[#allocation9 + $0xb8] sm:$0xff]
        %v570 = vld [vmem:[#allocation9 + $0xc0] sm:$0xff]
        %v571 = vld [vmem:[#allocation9 + $0xc8] sm:$0xff]
        %v572 = vld [vmem:[#allocation9 + $0xd0] sm:$0xff]
        %v573 = vld [vmem:[#allocation9 + $0xd8] sm:$0xff]
        %v574 = vld [vmem:[#allocation9 + $0xe0] sm:$0xff]
        %v575 = vld [vmem:[#allocation9 + $0xe8] sm:$0xff]
        %v576 = vld [vmem:[#allocation9 + $0xf0] sm:$0xff]
        %v577 = vld [vmem:[#allocation9 + $0xf8] sm:$0xff]
        %578 = vmatprep.subr.mxu0 0.0
        %579 = vmatpush1.msra.mxu0 %v546
        %580 = vmatprep.subr.mxu0 0.0
        %581 = vmatpush1.msra.mxu0 %v547
        %582 = vmatprep.subr.mxu0 0.0
        %583 = vmatpush1.msra.mxu0 %v548
        %584 = vmatprep.subr.mxu0 0.0
        %585 = vmatpush1.msra.mxu0 %v549
        %586 = vmatprep.subr.mxu0 0.0
        %587 = vmatpush1.msra.mxu0 %v550
        %588 = vmatprep.subr.mxu0 0.0
        %589 = vmatpush1.msra.mxu0 %v551
        %590 = vmatprep.subr.mxu0 0.0
        %591 = vmatpush1.msra.mxu0 %v552
        %592 = vmatprep.subr.mxu0 0.0
        %593 = vmatpush1.msra.mxu0 %v553
        %594 = vmatprep.subr.mxu0 0.0
        %595 = vmatpush1.msra.mxu0 %v554
        %596 = vmatprep.subr.mxu0 0.0
        %597 = vmatpush1.msra.mxu0 %v555
        %598 = vmatprep.subr.mxu0 0.0
        %599 = vmatpush1.msra.mxu0 %v556
        %600 = vmatprep.subr.mxu0 0.0
        %601 = vmatpush1.msra.mxu0 %v557
        %602 = vmatprep.subr.mxu0 0.0
        %603 = vmatpush1.msra.mxu0 %v558
        %604 = vmatprep.subr.mxu0 0.0
        %605 = vmatpush1.msra.mxu0 %v559
        %606 = vmatprep.subr.mxu0 0.0
        %607 = vmatpush1.msra.mxu0 %v560
        %608 = vmatprep.subr.mxu0 0.0
        %609 = vmatpush1.msra.mxu0 %v561
        %610 = vmatprep.subr.mxu0 0.0
        %611 = vmatpush1.msra.mxu0 %v562
        %612 = vmatprep.subr.mxu0 0.0
        %613 = vmatpush1.msra.mxu0 %v563
        %614 = vmatprep.subr.mxu0 0.0
        %615 = vmatpush1.msra.mxu0 %v564
        %616 = vmatprep.subr.mxu0 0.0
        %617 = vmatpush1.msra.mxu0 %v565
        %618 = vmatprep.subr.mxu0 0.0
        %619 = vmatpush1.msra.mxu0 %v566
        %620 = vmatprep.subr.mxu0 0.0
        %621 = vmatpush1.msra.mxu0 %v567
        %622 = vmatprep.subr.mxu0 0.0
        %623 = vmatpush1.msra.mxu0 %v568
        %624 = vmatprep.subr.mxu0 0.0
        %625 = vmatpush1.msra.mxu0 %v569
        %626 = vmatprep.subr.mxu0 0.0
        %627 = vmatpush1.msra.mxu0 %v570
        %628 = vmatprep.subr.mxu0 0.0
        %629 = vmatpush1.msra.mxu0 %v571
        %630 = vmatprep.subr.mxu0 0.0
        %631 = vmatpush1.msra.mxu0 %v572
        %632 = vmatprep.subr.mxu0 0.0
        %633 = vmatpush1.msra.mxu0 %v573
        %634 = vmatprep.subr.mxu0 0.0
        %635 = vmatpush1.msra.mxu0 %v574
        %636 = vmatprep.subr.mxu0 0.0
        %637 = vmatpush1.msra.mxu0 %v575
        %638 = vmatprep.subr.mxu0 0.0
        %639 = vmatpush1.msra.mxu0 %v576
        %640 = vmatprep.subr.mxu0 0.0
        %641 = vmatpush1.msra.mxu0 %v577
        %642 = vmatprep.mubr.f32.mxu0 %v545
        %643 = vmatmul.mubr.f32.gmra.mrb[0].mxu0 %v544
        %v644 = vpop.f32.mrb[0].mxu0
        %v645 = vadd.f32 0.0, %v644
        %v646 = vpop.f32.mrb[0].mxu0
        %647 = vdwg.mxu0
        %s648 = sld [smem:[#allocation10]]
        %s649 = sld [smem:[#allocation10 + $0x1]]
        %s650 = sld [smem:[#allocation10 + $0x2]]
        %651 = vadd.xlane.f32.xlu0 %v645
        %v652 = vpop.xlane.xlu0 %651
        %v653 = vmul.f32 %v645, %v645
        %654 = vadd.xlane.f32.xlu0 %v653
        %v655 = vpop.xlane.xlu0 %654
        %v656 = vmul.f32 %v652, 0.0078125
        %v657 = vmul.f32 %v652, %v656
        %v658 = vsub.f32 %v655, %v657
        %v659 = vmul.f32 %v658, 0.007874016
        %v660 = vrsqrt.pop %v659
        %v661 = vmul.f32 %v659, %v660
        %vm662 = vcmp.eq.f32.partialorder %v659, inf
        %v663 = vsel %vm662, %v659, %v661
        %vm664 = vcmp.eq.f32.partialorder %v659, 0.0
        %v665 = vand.u32 %v659, 2147483648
        %v666 = vsel %vm664, %v665, %v663
        %v667 = vadd.f32 %v666, 0.001
        %v668 = vrcp.pop %v667
        %v669 = vmul.f32 %v645, %v668
        %v670 = vmul.f32 %v656, %v668
        %v671 = vsub.f32 %v669, %v670
        %v672 = vstv %s649
        %v673 = vmul.f32 %v671, %v672
        %v674 = vtanh.pop %v673
        %v675 = vstv %s648
        %v676 = vmul.f32 %v674, %v675
        %v677 = vstv %s650
        %v678 = vmul.f32 %v676, %v677
        %v679 = vmul.f32 %v678, 1.442695
        %v680 = vpow.pop %v679
        %681 = vadd.xlane.f32.xlu0 %v680
        %v682 = vpop.xlane.xlu0 %681
        %v683 = vadd.f32 %v682, 0.001
        %v684 = vrcp.pop %v683
        %v685 = vmul.f32 %v680, %v684
        %v687 = vcombine.high %v685, %v685
        %v689 = vunpack.c.l.s4 1966171168
        %v690 = vunpack.c.0.s8 %v689
        %v691 = vlaneseq
        %v692 = vshrl.u32 %v691, 7
        %v693 = vsub.s32 %v690, %v692
        %v694 = vrot.slane %v685, %v693
        %v696 = vunpack.c.l.s4 1966171168
        %v697 = vunpack.c.0.s8 %v696
        %v698 = vlaneseq
        %v699 = vshrl.u32 %v698, 7
        %v700 = vsub.s32 %v697, %v699
        %v701 = vrot.slane %v687, %v700
        %v702 = vcombine.high %v694, %v694
        %v703 = vcombine.high %v701, %v701
        %v705 = vunpack.c.l.s4 1966171168
        %v706 = vunpack.c.0.s8 %v705
        %v707 = vlaneseq
        %v708 = vshrl.u32 %v707, 7
        %v709 = vsub.s32 %v706, %v708
        %v710 = vrot.slane %v694, %v709
        %v712 = vunpack.c.l.s4 1966171168
        %v713 = vunpack.c.0.s8 %v712
        %v714 = vlaneseq
        %v715 = vshrl.u32 %v714, 7
        %v716 = vsub.s32 %v713, %v715
        %v717 = vrot.slane %v701, %v716
        %v719 = vunpack.c.l.s4 1966171168
        %v720 = vunpack.c.0.s8 %v719
        %v721 = vlaneseq
        %v722 = vshrl.u32 %v721, 7
        %v723 = vsub.s32 %v720, %v722
        %v724 = vrot.slane %v702, %v723
        %v726 = vunpack.c.l.s4 1966171168
        %v727 = vunpack.c.0.s8 %v726
        %v728 = vlaneseq
        %v729 = vshrl.u32 %v728, 7
        %v730 = vsub.s32 %v727, %v729
        %v731 = vrot.slane %v703, %v730
        %v732 = vcombine.high %v710, %v710
        %v733 = vcombine.high %v717, %v717
        %v734 = vcombine.high %v724, %v724
        %v735 = vcombine.high %v731, %v731
        %v736 = vlaneseq
        %v737 = vshrl.u32 %v736, 7
        %v738 = vsub.s32 0, %v737
        %v739 = vrot.slane %v710, %v738
        %v740 = vlaneseq
        %v741 = vshrl.u32 %v740, 7
        %v742 = vsub.s32 0, %v741
        %v743 = vrot.slane %v724, %v742
        %v744 = vlaneseq
        %v745 = vshrl.u32 %v744, 7
        %v746 = vsub.s32 0, %v745
        %v747 = vrot.slane %v732, %v746
        %v748 = vlaneseq
        %v749 = vshrl.u32 %v748, 7
        %v750 = vsub.s32 0, %v749
        %v751 = vrot.slane %v734, %v750
        %v752 = vlaneseq
        %v753 = vshrl.u32 %v752, 7
        %v754 = vsub.s32 0, %v753
        %v755 = vrot.slane %v717, %v754
        %v756 = vlaneseq
        %v757 = vshrl.u32 %v756, 7
        %v758 = vsub.s32 0, %v757
        %v759 = vrot.slane %v731, %v758
        %v760 = vlaneseq
        %v761 = vshrl.u32 %v760, 7
        %v762 = vsub.s32 0, %v761
        %v763 = vrot.slane %v733, %v762
        %v764 = vlaneseq
        %v765 = vshrl.u32 %v764, 7
        %v766 = vsub.s32 0, %v765
        %v767 = vrot.slane %v735, %v766
        %v776 = vmul.f32 %v546, %v739
        %v777 = vmul.f32 %v547, %v739
        %v778 = vmul.f32 %v548, %v739
        %v779 = vmul.f32 %v549, %v739
        %v780 = vmul.f32 %v550, %v743
        %v781 = vmul.f32 %v551, %v743
        %v782 = vmul.f32 %v552, %v743
        %v783 = vmul.f32 %v553, %v743
        %v784 = vmul.f32 %v554, %v747
        %v785 = vmul.f32 %v555, %v747
        %v786 = vmul.f32 %v556, %v747
        %v787 = vmul.f32 %v557, %v747
        %v788 = vmul.f32 %v558, %v751
        %v789 = vmul.f32 %v559, %v751
        %v790 = vmul.f32 %v560, %v751
        %v791 = vmul.f32 %v561, %v751
        %v792 = vmul.f32 %v562, %v755
        %v793 = vmul.f32 %v563, %v755
        %v794 = vmul.f32 %v564, %v755
        %v795 = vmul.f32 %v565, %v755
        %v796 = vmul.f32 %v566, %v759
        %v797 = vmul.f32 %v567, %v759
        %v798 = vmul.f32 %v568, %v759
        %v799 = vmul.f32 %v569, %v759
        %v800 = vmul.f32 %v570, %v763
        %v801 = vmul.f32 %v571, %v763
        %v802 = vmul.f32 %v572, %v763
        %v803 = vmul.f32 %v573, %v763
        %v804 = vmul.f32 %v574, %v767
        %v805 = vmul.f32 %v575, %v767
        %v806 = vmul.f32 %v576, %v767
        %v807 = vmul.f32 %v577, %v767
        %808 = vadd.xlane.f32.xlu0 %v776
        %v809 = vpop.xlane.xlu0 %808
        %810 = vadd.xlane.f32.xlu0 %v777
        %v811 = vpop.xlane.xlu0 %810
        %812 = vadd.xlane.f32.xlu0 %v778
        %v813 = vpop.xlane.xlu0 %812
        %814 = vadd.xlane.f32.xlu0 %v779
        %v815 = vpop.xlane.xlu0 %814
        %816 = vadd.xlane.f32.xlu0 %v780
        %v817 = vpop.xlane.xlu0 %816
        %818 = vadd.xlane.f32.xlu0 %v781
        %v819 = vpop.xlane.xlu0 %818
        %820 = vadd.xlane.f32.xlu0 %v782
        %v821 = vpop.xlane.xlu0 %820
        %822 = vadd.xlane.f32.xlu0 %v783
        %v823 = vpop.xlane.xlu0 %822
        %824 = vadd.xlane.f32.xlu0 %v784
        %v825 = vpop.xlane.xlu0 %824
        %826 = vadd.xlane.f32.xlu0 %v785
        %v827 = vpop.xlane.xlu0 %826
        %828 = vadd.xlane.f32.xlu0 %v786
        %v829 = vpop.xlane.xlu0 %828
        %830 = vadd.xlane.f32.xlu0 %v787
        %v831 = vpop.xlane.xlu0 %830
        %832 = vadd.xlane.f32.xlu0 %v788
        %v833 = vpop.xlane.xlu0 %832
        %834 = vadd.xlane.f32.xlu0 %v789
        %v835 = vpop.xlane.xlu0 %834
        %836 = vadd.xlane.f32.xlu0 %v790
        %v837 = vpop.xlane.xlu0 %836
        %838 = vadd.xlane.f32.xlu0 %v791
        %v839 = vpop.xlane.xlu0 %838
        %840 = vadd.xlane.f32.xlu0 %v792
        %v841 = vpop.xlane.xlu0 %840
        %842 = vadd.xlane.f32.xlu0 %v793
        %v843 = vpop.xlane.xlu0 %842
        %844 = vadd.xlane.f32.xlu0 %v794
        %v845 = vpop.xlane.xlu0 %844
        %846 = vadd.xlane.f32.xlu0 %v795
        %v847 = vpop.xlane.xlu0 %846
        %848 = vadd.xlane.f32.xlu0 %v796
        %v849 = vpop.xlane.xlu0 %848
        %850 = vadd.xlane.f32.xlu0 %v797
        %v851 = vpop.xlane.xlu0 %850
        %852 = vadd.xlane.f32.xlu0 %v798
        %v853 = vpop.xlane.xlu0 %852
        %854 = vadd.xlane.f32.xlu0 %v799
        %v855 = vpop.xlane.xlu0 %854
        %856 = vadd.xlane.f32.xlu0 %v800
        %v857 = vpop.xlane.xlu0 %856
        %858 = vadd.xlane.f32.xlu0 %v801
        %v859 = vpop.xlane.xlu0 %858
        %860 = vadd.xlane.f32.xlu0 %v802
        %v861 = vpop.xlane.xlu0 %860
        %862 = vadd.xlane.f32.xlu0 %v803
        %v863 = vpop.xlane.xlu0 %862
        %864 = vadd.xlane.f32.xlu0 %v804
        %v865 = vpop.xlane.xlu0 %864
        %866 = vadd.xlane.f32.xlu0 %v805
        %v867 = vpop.xlane.xlu0 %866
        %868 = vadd.xlane.f32.xlu0 %v806
        %v869 = vpop.xlane.xlu0 %868
        %870 = vadd.xlane.f32.xlu0 %v807
        %v871 = vpop.xlane.xlu0 %870
        %v904 = vlaneseq
        %v905 = vand.u32 %v904, 127
        %v906 = vlaneseq
        %v907 = vshrl.u32 %v906, 7
        %v908 = vsub.s32 %v905, %v907
        %v909 = vrot.slane %v809, %v908
        %v910 = vadd.s32 %v905, 4294967288
        %v911 = vlaneseq
        %v912 = vshrl.u32 %v911, 7
        %v913 = vsub.s32 %v910, %v912
        %v914 = vrot.slane %v811, %v913
        %vm915 = vcmask 130112
        %v916 = vsel %vm915, %v914, %v909
        %v917 = vadd.s32 %v905, 4294967280
        %v918 = vlaneseq
        %v919 = vshrl.u32 %v918, 7
        %v920 = vsub.s32 %v917, %v919
        %v921 = vrot.slane %v813, %v920
        %vm922 = vcmask 195712
        %v923 = vsel %vm922, %v921, %v916
        %v924 = vadd.s32 %v905, 4294967272
        %v925 = vlaneseq
        %v926 = vshrl.u32 %v925, 7
        %v927 = vsub.s32 %v924, %v926
        %v928 = vrot.slane %v815, %v927
        %vm929 = vcmask 261312
        %v930 = vsel %vm929, %v928, %v923
        %v931 = vlaneseq
        %v932 = vshrl.u32 %v931, 7
        %v933 = vsub.s32 %v905, %v932
        %v934 = vrot.slane %v817, %v933
        %v935 = vlaneseq
        %v936 = vshrl.u32 %v935, 7
        %v937 = vsub.s32 %v910, %v936
        %v938 = vrot.slane %v819, %v937
        %v939 = vsel %vm915, %v938, %v934
        %v940 = vlaneseq
        %v941 = vshrl.u32 %v940, 7
        %v942 = vsub.s32 %v917, %v941
        %v943 = vrot.slane %v821, %v942
        %v944 = vsel %vm922, %v943, %v939
        %v945 = vlaneseq
        %v946 = vshrl.u32 %v945, 7
        %v947 = vsub.s32 %v924, %v946
        %v948 = vrot.slane %v823, %v947
        %v949 = vsel %vm929, %v948, %v944
        %v950 = vlaneseq
        %v951 = vshrl.u32 %v950, 7
        %v952 = vsub.s32 %v905, %v951
        %v953 = vrot.slane %v825, %v952
        %v954 = vlaneseq
        %v955 = vshrl.u32 %v954, 7
        %v956 = vsub.s32 %v910, %v955
        %v957 = vrot.slane %v827, %v956
        %v958 = vsel %vm915, %v957, %v953
        %v959 = vlaneseq
        %v960 = vshrl.u32 %v959, 7
        %v961 = vsub.s32 %v917, %v960
        %v962 = vrot.slane %v829, %v961
        %v963 = vsel %vm922, %v962, %v958
        %v964 = vlaneseq
        %v965 = vshrl.u32 %v964, 7
        %v966 = vsub.s32 %v924, %v965
        %v967 = vrot.slane %v831, %v966
        %v968 = vsel %vm929, %v967, %v963
        %v969 = vlaneseq
        %v970 = vshrl.u32 %v969, 7
        %v971 = vsub.s32 %v905, %v970
        %v972 = vrot.slane %v833, %v971
        %v973 = vlaneseq
        %v974 = vshrl.u32 %v973, 7
        %v975 = vsub.s32 %v910, %v974
        %v976 = vrot.slane %v835, %v975
        %v977 = vsel %vm915, %v976, %v972
        %v978 = vlaneseq
        %v979 = vshrl.u32 %v978, 7
        %v980 = vsub.s32 %v917, %v979
        %v981 = vrot.slane %v837, %v980
        %v982 = vsel %vm922, %v981, %v977
        %v983 = vlaneseq
        %v984 = vshrl.u32 %v983, 7
        %v985 = vsub.s32 %v924, %v984
        %v986 = vrot.slane %v839, %v985
        %v987 = vsel %vm929, %v986, %v982
        %v988 = vlaneseq
        %v989 = vshrl.u32 %v988, 7
        %v990 = vsub.s32 %v905, %v989
        %v991 = vrot.slane %v841, %v990
        %v992 = vlaneseq
        %v993 = vshrl.u32 %v992, 7
        %v994 = vsub.s32 %v910, %v993
        %v995 = vrot.slane %v843, %v994
        %v996 = vsel %vm915, %v995, %v991
        %v997 = vlaneseq
        %v998 = vshrl.u32 %v997, 7
        %v999 = vsub.s32 %v917, %v998
        %v1000 = vrot.slane %v845, %v999
        %v1001 = vsel %vm922, %v1000, %v996
        %v1002 = vlaneseq
        %v1003 = vshrl.u32 %v1002, 7
        %v1004 = vsub.s32 %v924, %v1003
        %v1005 = vrot.slane %v847, %v1004
        %v1006 = vsel %vm929, %v1005, %v1001
        %v1007 = vlaneseq
        %v1008 = vshrl.u32 %v1007, 7
        %v1009 = vsub.s32 %v905, %v1008
        %v1010 = vrot.slane %v849, %v1009
        %v1011 = vlaneseq
        %v1012 = vshrl.u32 %v1011, 7
        %v1013 = vsub.s32 %v910, %v1012
        %v1014 = vrot.slane %v851, %v1013
        %v1015 = vsel %vm915, %v1014, %v1010
        %v1016 = vlaneseq
        %v1017 = vshrl.u32 %v1016, 7
        %v1018 = vsub.s32 %v917, %v1017
        %v1019 = vrot.slane %v853, %v1018
        %v1020 = vsel %vm922, %v1019, %v1015
        %v1021 = vlaneseq
        %v1022 = vshrl.u32 %v1021, 7
        %v1023 = vsub.s32 %v924, %v1022
        %v1024 = vrot.slane %v855, %v1023
        %v1025 = vsel %vm929, %v1024, %v1020
        %v1026 = vlaneseq
        %v1027 = vshrl.u32 %v1026, 7
        %v1028 = vsub.s32 %v905, %v1027
        %v1029 = vrot.slane %v857, %v1028
        %v1030 = vlaneseq
        %v1031 = vshrl.u32 %v1030, 7
        %v1032 = vsub.s32 %v910, %v1031
        %v1033 = vrot.slane %v859, %v1032
        %v1034 = vsel %vm915, %v1033, %v1029
        %v1035 = vlaneseq
        %v1036 = vshrl.u32 %v1035, 7
        %v1037 = vsub.s32 %v917, %v1036
        %v1038 = vrot.slane %v861, %v1037
        %v1039 = vsel %vm922, %v1038, %v1034
        %v1040 = vlaneseq
        %v1041 = vshrl.u32 %v1040, 7
        %v1042 = vsub.s32 %v924, %v1041
        %v1043 = vrot.slane %v863, %v1042
        %v1044 = vsel %vm929, %v1043, %v1039
        %v1045 = vlaneseq
        %v1046 = vshrl.u32 %v1045, 7
        %v1047 = vsub.s32 %v905, %v1046
        %v1048 = vrot.slane %v865, %v1047
        %v1049 = vlaneseq
        %v1050 = vshrl.u32 %v1049, 7
        %v1051 = vsub.s32 %v910, %v1050
        %v1052 = vrot.slane %v867, %v1051
        %v1053 = vsel %vm915, %v1052, %v1048
        %v1054 = vlaneseq
        %v1055 = vshrl.u32 %v1054, 7
        %v1056 = vsub.s32 %v917, %v1055
        %v1057 = vrot.slane %v869, %v1056
        %v1058 = vsel %vm922, %v1057, %v1053
        %v1059 = vlaneseq
        %v1060 = vshrl.u32 %v1059, 7
        %v1061 = vsub.s32 %v924, %v1060
        %v1062 = vrot.slane %v871, %v1061
        %v1063 = vsel %vm929, %v1062, %v1058
        %vm1064 = vcmask 1041409
        %v1065 = vsel %vm1064, %v949, %v930
        %vm1066 = vcmask 1042434
        %v1067 = vsel %vm1066, %v968, %v1065
        %vm1068 = vcmask 1043459
        %v1069 = vsel %vm1068, %v987, %v1067
        %vm1070 = vcmask 1044484
        %v1071 = vsel %vm1070, %v1006, %v1069
        %vm1072 = vcmask 1045509
        %v1073 = vsel %vm1072, %v1025, %v1071
        %vm1074 = vcmask 1046534
        %v1075 = vsel %vm1074, %v1044, %v1073
        %vm1076 = vcmask 1047559
        %v1077 = vsel %vm1076, %v1063, %v1075
        %1079 = vst.msk [vmem:[#allocation2] sm:$0xff] %vm493, %v1077
        %1080 = vst.msk [vmem:[%s334] sm:$0xff] %vm493, %v1077
        %s1081 = sand.u32 %s186, 1
        %s1082 = scalar_lea.sflag [#allocation5], %s1081
        %s1083 = sand.u32 %s186, 1
        %s1084 = smul.addr %s1083, 8
        %s1085 = scalar_lea.vmem [#allocation11], %s1084
        // Predicated region
        $region69: #{_core_forward_ticks_impl.1} parent=47 // pred_check
          %p1086 = pneg %p196
        $region70: #{_core_forward_ticks_impl.1} parent=47 // pred_check_branch
          %1088 = sbr.rel (%p1086) target = $region72
        $region71: #{_core_forward_ticks_impl.1} parent=47 // pred_region
          %s1090 = ssub.s32 128, 128
          %1091 = vsyncadd %s1082, %s1090
          %s1092 = smul.addr %s26, 128
          %s1093 = scalar_lea.hbm %s7, %s1092
          %s1095 = sshll.u32 %s1085, 4
          %s1096 = int_to_ptr.vmem [resolvable:$true] %s1095
          %1098 = dma.vmem_to_hbm [thread:$0]  %s1096, 128, %s1093, %s1082
        $region72: #{_core_forward_ticks_impl.1} parent=47 // pred_fallthru
          _
      $region48: #{_core_forward_ticks_impl.1} parent=5 // pred_fallthru
        _
      %p1099 = scmp.le.s32.totalorder 2, %s21
      // Predicated region
      $region73: #{_core_forward_ticks_impl.1} parent=5 // pred_check
        %p1100 = pneg %p1099
      $region74: #{_core_forward_ticks_impl.1} parent=5 // pred_check_branch
        %1102 = sbr.rel (%p1100) target = $region76
      $region75: #{_core_forward_ticks_impl.1} parent=5 // pred_region
        %s1103 = ssub.s32 %s21, 2
        // Predicated region
        $region77: #{_core_forward_ticks_impl.1} parent=75 // pred_check
          %p1104 = pneg %p202
        $region78: #{_core_forward_ticks_impl.1} parent=75 // pred_check_branch
          %1106 = sbr.rel (%p1104) target = $region80
        $region79: #{_core_forward_ticks_impl.1} parent=75 // pred_region
          %s1107 = sand.u32 %s187, 1
          %s1108 = scalar_lea.sflag [#allocation5], %s1107
          %s1109 = sand.u32 %s187, 1
          %s1110 = smul.addr %s1109, 8
          %s1111 = scalar_lea.vmem [#allocation11], %s1110
          %1112 = dma.done %s1108, 128
        $region80: #{_core_forward_ticks_impl.1} parent=75 // pred_fallthru
          _
      $region76: #{_core_forward_ticks_impl.1} parent=5 // pred_fallthru
        _
    $region6: #{_core_forward_ticks_impl.1} parent=1 // loop_footer
      %s25 = sadd.s32 1, %s21
    $region7: #{_core_forward_ticks_impl.1} parent=1 // loop_footer_branch
      %20 = sbr.rel target = $region3
    $region8: #{_core_forward_ticks_impl.1} parent=1 // loop_exit
      _
    %1113 = vsyncpa [#allocation4], 1
    %s1114 = scalar_lea.sflag [#allocation4], 1
    %1115 = vsyncpa %s1114, 1
    %1116 = vsyncpa [#allocation8], 1
    %1117 = vsyncpa [#allocation5], 1
    %s1118 = scalar_lea.sflag [#allocation5], 1
    %1119 = vsyncpa %s1118, 1
    %1120 = vsyncpa [#allocation6], 1
    %s1121 = scalar_lea.sflag [#allocation6], 1
    %1122 = vsyncpa %s1121, 1

</llo_original>
